<compile_context>
chip_gen: v7x
topology: tpu7x:2x2x1
jax: 0.10.0
libtpu: 0.0.40
codegen_flags: <defaults>
</compile_context>

<pallas_src>
import functools

import jax
import jax.numpy as jnp
from jax import lax
from jax.experimental import pallas as pl
from jax.experimental.pallas import tpu as pltpu


def _attention_kernel(x_full_ref, x_q_ref, wq_ref, wk_ref, wv_ref, wp_ref,
                      bp_ref, o_ref, acc_ref, *,
                      num_heads, in_dim, seq_len, q_tile, num_patches):
    qi = pl.program_id(1)       # query-tile index
    h = pl.program_id(2)        # head index (innermost, "arbitrary")

    x_full = x_full_ref[0]      # (N, C)  -- full sequence (for K, V)
    x_q = x_q_ref[0]            # (q_tile, C) -- query rows (also the residual)

    # Per-head projections.  The learnable per-head scale is already folded
    # into wq on the host, so q arrives pre-scaled.
    q = jnp.dot(x_q, wq_ref[0], preferred_element_type=jnp.float32)      # (tq, d)
    k = jnp.dot(x_full, wk_ref[0], preferred_element_type=jnp.float32)   # (N, d)
    v = jnp.dot(x_full, wv_ref[0], preferred_element_type=jnp.float32)   # (N, d)

    # Scores: contract on head_dim directly (no explicit transpose).
    s = lax.dot_general(q, k, dimension_numbers=(((1,), (1,)), ((), ())),
                        preferred_element_type=jnp.float32)              # (tq, N)

    # LMSA: mask the diagonal (query index == key index) with a large negative
    # finite value (robust, matches -inf + softmax numerically for N >= 2).
    q0 = qi * q_tile
    row = q0 + lax.broadcasted_iota(jnp.int32, (q_tile, seq_len), 0)
    col = lax.broadcasted_iota(jnp.int32, (q_tile, seq_len), 1)
    mask = row == col
    if num_patches < seq_len:
        mask = mask & (row < num_patches)
    s = jnp.where(mask, jnp.float32(-1e30), s)

    # Softmax over keys, all in f32; approx reciprocal runs on the (idle) EUP.
    s = s - jnp.max(s, axis=-1, keepdims=True)
    p = jnp.exp(s)
    p = p * pl.reciprocal(jnp.sum(p, axis=-1, keepdims=True), approx=True)

    # PV for this head, then fold this head's slice of the output projection
    # into the f32 accumulator:  concat_h(p_h @ v_h) @ Wp
    #                         == sum_h (p_h @ v_h) @ Wp[h*d:(h+1)*d, :]
    pv = jnp.dot(p.astype(v.dtype), v, preferred_element_type=jnp.float32)   # (tq, d)
    contrib = jnp.dot(pv.astype(wp_ref.dtype), wp_ref[0],
                      preferred_element_type=jnp.float32)                    # (tq, in_dim)

    @pl.when(h == 0)
    def _():
        acc_ref[...] = jnp.zeros_like(acc_ref)

    acc_ref[...] += contrib

    @pl.when(h == num_heads - 1)
    def _():
        out = acc_ref[...] + bp_ref[...].astype(jnp.float32)    # (tq, in_dim)
        if num_heads == 1:
            # residual is v itself (single head, head_dim == in_dim); recompute
            # just the query rows -- a tiny (tq, C) @ (C, in_dim) matmul.
            res = jnp.dot(x_q, wv_ref[0], preferred_element_type=jnp.float32)
        else:
            res = x_q.astype(jnp.float32)                       # requires C == in_dim
        o_ref[0] = (out + res).astype(o_ref.dtype)


def _pick_q_tile(n):
    if n <= 512:
        return n
    for t in (512, 384, 256, 128, 64, 32, 16, 8):
        if n % t == 0:
            return t
    return n


def lmsa_attention(x, wqkv, scale, wp, bp, *, num_heads, in_dim,
                   num_patches=None, q_tile=None):
    B, N, C = x.shape
    H = num_heads
    assert in_dim % H == 0, "in_dim must be divisible by num_heads"
    d = in_dim // H
    if H != 1:
        assert C == in_dim, "residual (x + proj) requires C == in_dim when num_heads > 1"
    if num_patches is None:
        num_patches = N
    if q_tile is None:
        q_tile = _pick_q_tile(N)
    assert N % q_tile == 0, "q_tile must divide the sequence length"
    nq = N // q_tile

    # ---- host-side weight re-layout (cheap, done once per call) -------------
    scale = jnp.asarray(scale).reshape(H)
    wq = wqkv[:, 0 * in_dim:1 * in_dim].reshape(C, H, d).transpose(1, 0, 2)   # (H, C, d)
    wk = wqkv[:, 1 * in_dim:2 * in_dim].reshape(C, H, d).transpose(1, 0, 2)   # (H, C, d)
    wv = wqkv[:, 2 * in_dim:3 * in_dim].reshape(C, H, d).transpose(1, 0, 2)   # (H, C, d)
    wq = wq * scale[:, None, None].astype(wq.dtype)   # fold LMSA scale into q-proj
    wp_h = wp.reshape(H, d, in_dim)                   # per-head rows of the out-proj
    bp2 = bp.reshape(1, in_dim)

    kernel = functools.partial(
        _attention_kernel, num_heads=H, in_dim=in_dim, seq_len=N,
        q_tile=q_tile, num_patches=num_patches)

    itemsize = jnp.dtype(x.dtype).itemsize
    flops = 2 * B * (N * C * 3 * in_dim + 2 * H * N * N * d + N * in_dim * in_dim)
    bytes_accessed = ((x.size + wqkv.size + wp.size + bp.size) * itemsize
                      + B * N * in_dim * itemsize)
    cost = pl.CostEstimate(flops=flops, transcendentals=B * H * N * N,
                           bytes_accessed=bytes_accessed)

    return pl.pallas_call(
        kernel,
        out_shape=jax.ShapeDtypeStruct((B, N, in_dim), x.dtype),
        grid_spec=pltpu.PrefetchScalarGridSpec(
            num_scalar_prefetch=0,
            grid=(B, nq, H),
            in_specs=[
                pl.BlockSpec((1, N, C), lambda b, qi, h: (b, 0, 0)),        # x (full, K/V)
                pl.BlockSpec((1, q_tile, C), lambda b, qi, h: (b, qi, 0)),  # x (query tile)
                pl.BlockSpec((1, C, d), lambda b, qi, h: (h, 0, 0)),        # Wq (scale folded)
                pl.BlockSpec((1, C, d), lambda b, qi, h: (h, 0, 0)),        # Wk
                pl.BlockSpec((1, C, d), lambda b, qi, h: (h, 0, 0)),        # Wv
                pl.BlockSpec((1, d, in_dim), lambda b, qi, h: (h, 0, 0)),   # Wp rows, head h
                pl.BlockSpec((1, in_dim), lambda b, qi, h: (0, 0)),         # bias
            ],
            out_specs=pl.BlockSpec((1, q_tile, in_dim), lambda b, qi, h: (b, qi, 0)),
            scratch_shapes=[pltpu.VMEM((q_tile, in_dim), jnp.float32)],
        ),
        compiler_params=pltpu.CompilerParams(
            dimension_semantics=("parallel", "parallel", "arbitrary")),
        cost_estimate=cost,
    )(x, x, wq, wk, wv, wp_h, bp2)


def reference(x, wqkv, scale, wp, bp, *, num_heads, in_dim):
    # Pure-JAX reference mirroring the PyTorch forward.
    B, N, C = x.shape
    d = in_dim // num_heads
    qkv = x @ wqkv                                           # (B, N, 3*in_dim)
    qkv = qkv.reshape(B, N, 3, num_heads, d).transpose(2, 0, 3, 1, 4)
    q, k, v = qkv[0], qkv[1], qkv[2]                         # (B, H, N, d)
    attn = jnp.einsum('bhid,bhjd->bhij', q, k) * scale.reshape(1, num_heads, 1, 1)
    eye = jnp.eye(N, dtype=bool)
    attn = jnp.where(eye[None, None], -jnp.inf, attn)
    attn = jax.nn.softmax(attn, axis=-1)
    out = jnp.einsum('bhij,bhjd->bhid', attn, v)
    out = out.transpose(0, 2, 1, 3).reshape(B, N, in_dim)
    out = out @ wp + bp
    if num_heads == 1:
        out = out + v[:, 0]
    else:
        out = out + x
    return out


if __name__ == "__main__":
    # TODO(synk): attn_drop / proj_drop (nn.Dropout, rate 0.0 / eval mode) are
    # no-ops and are not implemented in the kernel.
    base_key = jax.random.PRNGKey(0)

    def run_case(name, case_idx, B, N, dim, in_dim, num_heads):
        key = jax.random.fold_in(base_key, case_idx)
        kx, kw1, kw2, kb = jax.random.split(key, 4)
        x = jax.random.normal(kx, (B, N, dim), dtype=jnp.float32)
        wqkv = 0.02 * jax.random.normal(kw1, (dim, 3 * in_dim), dtype=jnp.float32)
        wp = 0.02 * jax.random.normal(kw2, (in_dim, in_dim), dtype=jnp.float32)
        bp = 0.01 * jax.random.normal(kb, (1, in_dim), dtype=jnp.float32)
        head_dim = dim // num_heads
        # nn.Parameter(head_dim**-0.5 * ones(num_heads))
        scale = (head_dim ** -0.5) * jnp.ones((1, num_heads), dtype=jnp.float32)

        out = lmsa_attention(x, wqkv, scale, wp, bp,
                             num_heads=num_heads, in_dim=in_dim)
        out = jax.block_until_ready(out)

        ref = reference(x, wqkv, scale.reshape(num_heads), wp, bp[0],
                        num_heads=num_heads, in_dim=in_dim)
        # slightly loosened tolerance: scale folded into Wq + EUP approx
        # reciprocal in the softmax denominator.
        assert jnp.allclose(out, ref, rtol=2e-3, atol=2e-3), f"{name}: mismatch vs reference"

    # Small shapes consistent with the module.
    run_case("multi_head", 0, B=2, N=8, dim=32, in_dim=32, num_heads=4)
    run_case("single_head", 1, B=2, N=8, dim=16, in_dim=32, num_heads=1)

    print("KERNEL_OK")
</pallas_src>

<mosaic_0001>
module attributes {stable_mosaic.version = 11 : i64} {
  func.func @_attention_kernel(%arg0: i32, %arg1: i32, %arg2: i32, %arg3: memref<1x8x32xf32, #tpu.memory_space<vmem>>, %arg4: memref<1x8x32xf32, #tpu.memory_space<vmem>>, %arg5: memref<1x32x8xf32, #tpu.memory_space<vmem>>, %arg6: memref<1x32x8xf32, #tpu.memory_space<vmem>>, %arg7: memref<1x32x8xf32, #tpu.memory_space<vmem>>, %arg8: memref<1x8x32xf32, #tpu.memory_space<vmem>>, %arg9: memref<1x32xf32, #tpu.memory_space<vmem>>, %arg10: memref<1x8x32xf32, #tpu.memory_space<vmem>>, %arg11: memref<8x32xf32, #tpu.memory_space<vmem>>) attributes {dimension_semantics = [#tpu.dimension_semantics<parallel>, #tpu.dimension_semantics<parallel>, #tpu.dimension_semantics<arbitrary>], iteration_bounds = array<i64: 2, 1, 4>, scalar_prefetch = 0 : i64, scratch_operands = 1 : i64, tpu.core_type = #tpu.core_type<tc>, window_params = [{transform_indices = @transform_0, window_bounds = array<i64: 1, 8, 32>}, {transform_indices = @transform_1, window_bounds = array<i64: 1, 8, 32>}, {transform_indices = @transform_2, window_bounds = array<i64: 1, 32, 8>}, {transform_indices = @transform_3, window_bounds = array<i64: 1, 32, 8>}, {transform_indices = @transform_4, window_bounds = array<i64: 1, 32, 8>}, {transform_indices = @transform_5, window_bounds = array<i64: 1, 8, 32>}, {pipeline_mode = #tpu.pipeline_mode<synchronous>, transform_indices = @transform_6, window_bounds = array<i64: 1, 32>}, {transform_indices = @transform_7, window_bounds = array<i64: 1, 8, 32>}]} {
    %c0 = arith.constant 0 : index
    %c0_0 = arith.constant 0 : index
    %c0_1 = arith.constant 0 : index
    %0 = vector.load %arg3[%c0, %c0_0, %c0_1] : memref<1x8x32xf32, #tpu.memory_space<vmem>>, vector<1x8x32xf32>
    %1 = vector.shape_cast %0 : vector<1x8x32xf32> to vector<8x32xf32>
    %c0_2 = arith.constant 0 : index
    %c0_3 = arith.constant 0 : index
    %c0_4 = arith.constant 0 : index
    %2 = vector.load %arg4[%c0_2, %c0_3, %c0_4] : memref<1x8x32xf32, #tpu.memory_space<vmem>>, vector<1x8x32xf32>
    %3 = vector.shape_cast %2 : vector<1x8x32xf32> to vector<8x32xf32>
    %c0_5 = arith.constant 0 : index
    %c0_6 = arith.constant 0 : index
    %c0_7 = arith.constant 0 : index
    %4 = vector.load %arg5[%c0_5, %c0_6, %c0_7] : memref<1x32x8xf32, #tpu.memory_space<vmem>>, vector<1x32x8xf32>
    %5 = vector.shape_cast %4 : vector<1x32x8xf32> to vector<32x8xf32>
    %cst = arith.constant dense<0.000000e+00> : vector<8x8xf32>
    %6 = tpu.matmul %3, %5, %cst {dimension_numbers = #tpu.dot_dimension_numbers<[1], [0], [0], [1], [0, 0, 1, 1], [], []>} : vector<8x32xf32>, vector<32x8xf32>, vector<8x8xf32> -> vector<8x8xf32>
    %c0_8 = arith.constant 0 : index
    %c0_9 = arith.constant 0 : index
    %c0_10 = arith.constant 0 : index
    %7 = vector.load %arg6[%c0_8, %c0_9, %c0_10] : memref<1x32x8xf32, #tpu.memory_space<vmem>>, vector<1x32x8xf32>
    %8 = vector.shape_cast %7 : vector<1x32x8xf32> to vector<32x8xf32>
    %cst_11 = arith.constant dense<0.000000e+00> : vector<8x8xf32>
    %9 = tpu.matmul %1, %8, %cst_11 {dimension_numbers = #tpu.dot_dimension_numbers<[1], [0], [0], [1], [0, 0, 1, 1], [], []>} : vector<8x32xf32>, vector<32x8xf32>, vector<8x8xf32> -> vector<8x8xf32>
    %c0_12 = arith.constant 0 : index
    %c0_13 = arith.constant 0 : index
    %c0_14 = arith.constant 0 : index
    %10 = vector.load %arg7[%c0_12, %c0_13, %c0_14] : memref<1x32x8xf32, #tpu.memory_space<vmem>>, vector<1x32x8xf32>
    %11 = vector.shape_cast %10 : vector<1x32x8xf32> to vector<32x8xf32>
    %cst_15 = arith.constant dense<0.000000e+00> : vector<8x8xf32>
    %12 = tpu.matmul %1, %11, %cst_15 {dimension_numbers = #tpu.dot_dimension_numbers<[1], [0], [0], [1], [0, 0, 1, 1], [], []>} : vector<8x32xf32>, vector<32x8xf32>, vector<8x8xf32> -> vector<8x8xf32>
    %cst_16 = arith.constant dense<0.000000e+00> : vector<8x8xf32>
    %13 = tpu.matmul %6, %9, %cst_16 {dimension_numbers = #tpu.dot_dimension_numbers<[1], [1], [0], [0], [0, 0, 1, 0], [], []>} : vector<8x8xf32>, vector<8x8xf32>, vector<8x8xf32> -> vector<8x8xf32>
    %c8_i32 = arith.constant 8 : i32
    %14 = arith.muli %arg1, %c8_i32 : i32
    %15 = tpu.iota {dimensions = array<i32: 0>} : vector<8x8xi32>
    %16 = vector.broadcast %14 : i32 to vector<8x8xi32>
    %17 = arith.addi %16, %15 : vector<8x8xi32>
    %18 = tpu.iota {dimensions = array<i32: 1>} : vector<8x8xi32>
    %19 = arith.cmpi eq, %17, %18 : vector<8x8xi32>
    %cst_17 = arith.constant -1.000000e+30 : f32
    %20 = vector.broadcast %cst_17 : f32 to vector<8x8xf32>
    %21 = arith.select %19, %20, %13 : vector<8x8xi1>, vector<8x8xf32>
    %cst_18 = arith.constant dense<0xFF800000> : vector<8xf32>
    %22 = vector.multi_reduction <maximumf>, %21, %cst_18 [1] : vector<8x8xf32> to vector<8xf32>
    %23 = vector.shape_cast %22 : vector<8xf32> to vector<8x1xf32>
    %24 = vector.broadcast %23 : vector<8x1xf32> to vector<8x8xf32>
    %25 = arith.subf %21, %24 : vector<8x8xf32>
    %26 = math.exp %25 : vector<8x8xf32>
    %cst_19 = arith.constant dense<0.000000e+00> : vector<8xf32>
    %27 = vector.multi_reduction <add>, %26, %cst_19 [1] : vector<8x8xf32> to vector<8xf32>
    %28 = vector.shape_cast %27 : vector<8xf32> to vector<8x1xf32>
    %29 = tpu.reciprocal %28 {approx = true} : vector<8x1xf32> -> vector<8x1xf32>
    %30 = vector.broadcast %29 : vector<8x1xf32> to vector<8x8xf32>
    %31 = arith.mulf %26, %30 : vector<8x8xf32>
    %cst_20 = arith.constant dense<0.000000e+00> : vector<8x8xf32>
    %32 = tpu.matmul %31, %12, %cst_20 {dimension_numbers = #tpu.dot_dimension_numbers<[1], [0], [0], [1], [0, 0, 1, 1], [], []>} : vector<8x8xf32>, vector<8x8xf32>, vector<8x8xf32> -> vector<8x8xf32>
    %c0_21 = arith.constant 0 : index
    %c0_22 = arith.constant 0 : index
    %c0_23 = arith.constant 0 : index
    %33 = vector.load %arg8[%c0_21, %c0_22, %c0_23] : memref<1x8x32xf32, #tpu.memory_space<vmem>>, vector<1x8x32xf32>
    %34 = vector.shape_cast %33 : vector<1x8x32xf32> to vector<8x32xf32>
    %cst_24 = arith.constant dense<0.000000e+00> : vector<8x32xf32>
    %35 = tpu.matmul %32, %34, %cst_24 {dimension_numbers = #tpu.dot_dimension_numbers<[1], [0], [0], [1], [0, 0, 1, 1], [], []>} : vector<8x8xf32>, vector<8x32xf32>, vector<8x32xf32> -> vector<8x32xf32>
    %c0_i32 = arith.constant 0 : i32
    %36 = arith.cmpi eq, %arg2, %c0_i32 : i32
    %37 = arith.extui %36 : i1 to i32
    %c0_i32_25 = arith.constant 0 : i32
    %38 = arith.cmpi ne, %37, %c0_i32_25 : i32
    scf.if %38 {
      %cst_31 = arith.constant 0.000000e+00 : f32
      %45 = vector.broadcast %cst_31 : f32 to vector<8x32xf32>
      %c0_32 = arith.constant 0 : index
      %c0_33 = arith.constant 0 : index
      %46 = vector.load %arg11[%c0_32, %c0_33] : memref<8x32xf32, #tpu.memory_space<vmem>>, vector<8x32xf32>
      tpu.vector_store %arg11[%c0_32, %c0_33], %45 {strides = array<i32>} : memref<8x32xf32, #tpu.memory_space<vmem>>, vector<8x32xf32>,
    } else {
    }
    %c0_26 = arith.constant 0 : index
    %c0_27 = arith.constant 0 : index
    %39 = vector.load %arg11[%c0_26, %c0_27] : memref<8x32xf32, #tpu.memory_space<vmem>>, vector<8x32xf32>
    %40 = arith.addf %39, %35 : vector<8x32xf32>
    %c0_28 = arith.constant 0 : index
    %c0_29 = arith.constant 0 : index
    %41 = vector.load %arg11[%c0_28, %c0_29] : memref<8x32xf32, #tpu.memory_space<vmem>>, vector<8x32xf32>
    tpu.vector_store %arg11[%c0_28, %c0_29], %40 {strides = array<i32>} : memref<8x32xf32, #tpu.memory_space<vmem>>, vector<8x32xf32>,
    %c3_i32 = arith.constant 3 : i32
    %42 = arith.cmpi eq, %arg2, %c3_i32 : i32
    %43 = arith.extui %42 : i1 to i32
    %c0_i32_30 = arith.constant 0 : i32
    %44 = arith.cmpi ne, %43, %c0_i32_30 : i32
    scf.if %44 {
      %c0_31 = arith.constant 0 : index
      %c0_32 = arith.constant 0 : index
      %45 = vector.load %arg11[%c0_31, %c0_32] : memref<8x32xf32, #tpu.memory_space<vmem>>, vector<8x32xf32>
      %c0_33 = arith.constant 0 : index
      %c0_34 = arith.constant 0 : index
      %46 = vector.load %arg9[%c0_33, %c0_34] : memref<1x32xf32, #tpu.memory_space<vmem>>, vector<1x32xf32>
      %47 = vector.broadcast %46 : vector<1x32xf32> to vector<8x32xf32>
      %48 = arith.addf %45, %47 : vector<8x32xf32>
      %49 = arith.addf %48, %3 : vector<8x32xf32>
      %c0_35 = arith.constant 0 : index
      %c0_36 = arith.constant 0 : index
      %c0_37 = arith.constant 0 : index
      %50 = vector.load %arg10[%c0_35, %c0_36, %c0_37] : memref<1x8x32xf32, #tpu.memory_space<vmem>>, vector<1x8x32xf32>
      %51 = vector.shape_cast %50 : vector<1x8x32xf32> to vector<8x32xf32>
      %52 = vector.shape_cast %49 : vector<8x32xf32> to vector<1x8x32xf32>
      tpu.vector_store %arg10[%c0_35, %c0_36, %c0_37], %52 {strides = array<i32>} : memref<1x8x32xf32, #tpu.memory_space<vmem>>, vector<1x8x32xf32>,
    } else {
    }
    return
  }
  func.func @transform_0(%arg0: i32, %arg1: i32, %arg2: i32) -> (i32, i32, i32) {
    %c0_i32 = arith.constant 0 : i32
    %c0_i32_0 = arith.constant 0 : i32
    %c0_i32_1 = arith.constant 0 : i32
    return %arg0, %c0_i32, %c0_i32_0 : i32, i32, i32
  }
  func.func @transform_1(%arg0: i32, %arg1: i32, %arg2: i32) -> (i32, i32, i32) {
    %c0_i32 = arith.constant 0 : i32
    %c0_i32_0 = arith.constant 0 : i32
    return %arg0, %arg1, %c0_i32 : i32, i32, i32
  }
  func.func @transform_2(%arg0: i32, %arg1: i32, %arg2: i32) -> (i32, i32, i32) {
    %c0_i32 = arith.constant 0 : i32
    %c0_i32_0 = arith.constant 0 : i32
    %c0_i32_1 = arith.constant 0 : i32
    return %arg2, %c0_i32, %c0_i32_0 : i32, i32, i32
  }
  func.func @transform_3(%arg0: i32, %arg1: i32, %arg2: i32) -> (i32, i32, i32) {
    %c0_i32 = arith.constant 0 : i32
    %c0_i32_0 = arith.constant 0 : i32
    %c0_i32_1 = arith.constant 0 : i32
    return %arg2, %c0_i32, %c0_i32_0 : i32, i32, i32
  }
  func.func @transform_4(%arg0: i32, %arg1: i32, %arg2: i32) -> (i32, i32, i32) {
    %c0_i32 = arith.constant 0 : i32
    %c0_i32_0 = arith.constant 0 : i32
    %c0_i32_1 = arith.constant 0 : i32
    return %arg2, %c0_i32, %c0_i32_0 : i32, i32, i32
  }
  func.func @transform_5(%arg0: i32, %arg1: i32, %arg2: i32) -> (i32, i32, i32) {
    %c0_i32 = arith.constant 0 : i32
    %c0_i32_0 = arith.constant 0 : i32
    %c0_i32_1 = arith.constant 0 : i32
    return %arg2, %c0_i32, %c0_i32_0 : i32, i32, i32
  }
  func.func @transform_6(%arg0: i32, %arg1: i32, %arg2: i32) -> (i32, i32) {
    %c0_i32 = arith.constant 0 : i32
    %c0_i32_0 = arith.constant 0 : i32
    %c0_i32_1 = arith.constant 0 : i32
    return %c0_i32, %c0_i32_0 : i32, i32
  }
  func.func @transform_7(%arg0: i32, %arg1: i32, %arg2: i32) -> (i32, i32, i32) {
    %c0_i32 = arith.constant 0 : i32
    %c0_i32_0 = arith.constant 0 : i32
    return %arg0, %arg1, %c0_i32 : i32, i32, i32
  }
}

</mosaic_0001>

<llo_original>
// kernel: tpu_custom_call.1
$region0: #{tpu_custom_call.1}
  #allocation0 [shape = 'u32[]', space=smem, size = 0x4, offset = 0x4, fixed_abs, tag = 'smem constant byte address 0x4 - core index']
  #allocation1 [shape = 'u32[144,128]{1,0:T(1,128)}', space=vmem, size = 0x12000, scoped, tag = 'internal scratch']
  #allocation2 [shape = 'f32[8,32]{1,0:T(8,128)}', space=vmem, size = 0x1000, scoped, tag = 'scratch operand']
  %s0 = inlined_call_operand.vmem [shape: f32[2,8,32], index: 0, kind: input, shape index: {}]
  %s1 = inlined_call_operand.vmem [shape: f32[2,8,32], index: 1, kind: input, shape index: {}]
  %s2 = inlined_call_operand.vmem [shape: f32[4,32,8], index: 2, kind: input, shape index: {}]
  %s3 = inlined_call_operand.vmem [shape: f32[4,32,8], index: 3, kind: input, shape index: {}]
  %s4 = inlined_call_operand.vmem [shape: f32[4,32,8], index: 4, kind: input, shape index: {}]
  %s5 = inlined_call_operand.vmem [shape: f32[4,8,32], index: 5, kind: input, shape index: {}]
  %s6 = inlined_call_operand.vmem [shape: f32[1,32], index: 6, kind: input, shape index: {}]
  %s7 = inlined_call_operand.hbm [shape: f32[2,8,32], index: 7, kind: output, shape index: {}]
  %s8 = sld [smem:[#allocation0]]
  $region69: #{tpu_custom_call.1} parent=0
    _
  %s10 = ssub.s32 1, %s8
  %s11 = scalar_select 0, %s10, %s8
  $region1: #{tpu_custom_call.1} parent=0
    #allocation3 [shape = 'u8[8192]{0}', space=vmem, size = 0x2000, scoped, tag = 'output window, operand 0']
    #allocation4 [shape = 's32[2]{0}', space=sflag, size = 0x8, scoped, tag = 'scoped memory for tpu_custom_call.1']
    %12 = vsyncpa [#allocation4], 0
    %s13 = scalar_lea.sflag [#allocation4], 1
    %14 = vsyncpa %s13, 0
    loop: start=0, step=1, limit=10
    $region2: #{tpu_custom_call.1} parent=1 // loop_pre_header
      _
    $region3: #{tpu_custom_call.1} parent=1 // loop_header
      %s16 = sphi 0, %s20
      %p17 = scmp.ge.s32.totalorder %s16, 10
      %s23 = sphi 0, %s42
      %s24 = sphi 0, %s38
      %s25 = sphi 0, %s34
      %s26 = sphi 0, %s23
      %s27 = sphi 0, %s24
      %s28 = sphi 0, %s25
      %s29 = sphi 0, %s26
      %s30 = sphi 0, %s27
      %s31 = sphi 0, %s28
      %s45 = sphi 0, %s47
      %s48 = sphi 0, %s45
      %s49 = sphi 0, %s48
      %s65 = sphi 0, %s49
      %s73 = sphi 0, %s75
      %s76 = sphi 0, %s73
      %s77 = sphi 0, %s76
      %s93 = sphi 0, %s77
      %s99 = sphi 0, %s101
      %s102 = sphi 0, %s99
      %s103 = sphi 0, %s102
      %s119 = sphi 0, %s103
      %s125 = sphi 0, %s127
      %s128 = sphi 0, %s125
      %s129 = sphi 0, %s128
      %s145 = sphi 0, %s129
      %s151 = sphi 0, %s153
      %s154 = sphi 0, %s151
      %s155 = sphi 0, %s154
      %s171 = sphi 0, %s155
      %s177 = sphi 0, %s179
      %s180 = sphi 0, %s177
      %s181 = sphi 0, %s180
      %s197 = sphi 0, %s181
      %s201 = sphi 0, %s201
      %s203 = sphi 0, %s201
      %s204 = sphi 0, %s203
      %s218 = sphi 0, %s204
      %s226 = sphi 0, %s228
      %s229 = sphi 0, %s226
      %s230 = sphi 0, %s229
      %s246 = sphi 0, %s230
    $region4: #{tpu_custom_call.1} parent=1 // loop_header_branch
      %19 = sbr.rel (%p17) target = $region8
    $region5: #{tpu_custom_call.1} parent=1 // loop_body
      %s21 = ssub.s32 %s16, 1
      %s22 = ssub.s32 %s16, 2
      %s32 = sadd.s32 1, %s25
      %p33 = scmp.ge.s32.totalorder %s32, 4
      %s34 = scalar_select %p33, 0, %s32
      %s35 = sadd.s32 1, %s24
      %s36 = scalar_select %p33, %s35, %s24
      %p37 = scmp.ge.s32.totalorder %s36, 1
      %s38 = scalar_select %p37, 0, %s36
      %s39 = sadd.s32 1, %s23
      %s40 = scalar_select %p37, %s39, %s23
      %p41 = scmp.ge.s32.totalorder %s40, 2
      %s42 = scalar_select %p41, 0, %s40
      %s43 = ssub.s32 %s23, %s42
      %p44 = scmp.eq.s32.totalorder %s43, 0
      %s46 = sadd.s32 %s45, 1
      %s47 = scalar_select %p44, %s45, %s46
      %p50 = pneg %p44
      %p51 = scmp.eq.s32.totalorder %s16, 7
      %p52 = por %p50, %p51
      %p53 = scmp.ne.s32.totalorder %s45, %s48
      %p54 = scmp.eq.s32.totalorder %s16, 0
      %p55 = por %p53, %p54
      %p56 = scmp.ne.s32.totalorder %s45, %s48
      %p57 = scmp.eq.s32.totalorder %s21, 7
      %p58 = por %p56, %p57
      %p59 = scmp.ne.s32.totalorder %s48, %s49
      %p60 = scmp.eq.s32.totalorder %s21, 0
      %p61 = por %p59, %p60
      %p62 = scmp.ne.s32.totalorder %s48, %s49
      %p63 = scmp.eq.s32.totalorder %s22, 7
      %p64 = por %p62, %p63
      %p66 = scmp.ne.s32.totalorder %s49, %s65
      %p67 = scmp.eq.s32.totalorder %s22, 0
      %p68 = por %p66, %p67
      %s69 = ssub.s32 %s23, %s42
      %s70 = ssub.s32 %s24, %s38
      %s71 = sor.u32 %s69, %s70
      %p72 = scmp.eq.s32.totalorder %s71, 0
      %s74 = sadd.s32 %s73, 1
      %s75 = scalar_select %p72, %s73, %s74
      %p78 = pneg %p72
      %p79 = scmp.eq.s32.totalorder %s16, 7
      %p80 = por %p78, %p79
      %p81 = scmp.ne.s32.totalorder %s73, %s76
      %p82 = scmp.eq.s32.totalorder %s16, 0
      %p83 = por %p81, %p82
      %p84 = scmp.ne.s32.totalorder %s73, %s76
      %p85 = scmp.eq.s32.totalorder %s21, 7
      %p86 = por %p84, %p85
      %p87 = scmp.ne.s32.totalorder %s76, %s77
      %p88 = scmp.eq.s32.totalorder %s21, 0
      %p89 = por %p87, %p88
      %p90 = scmp.ne.s32.totalorder %s76, %s77
      %p91 = scmp.eq.s32.totalorder %s22, 7
      %p92 = por %p90, %p91
      %p94 = scmp.ne.s32.totalorder %s77, %s93
      %p95 = scmp.eq.s32.totalorder %s22, 0
      %p96 = por %p94, %p95
      %s97 = ssub.s32 %s25, %s34
      %p98 = scmp.eq.s32.totalorder %s97, 0
      %s100 = sadd.s32 %s99, 1
      %s101 = scalar_select %p98, %s99, %s100
      %p104 = pneg %p98
      %p105 = scmp.eq.s32.totalorder %s16, 7
      %p106 = por %p104, %p105
      %p107 = scmp.ne.s32.totalorder %s99, %s102
      %p108 = scmp.eq.s32.totalorder %s16, 0
      %p109 = por %p107, %p108
      %p110 = scmp.ne.s32.totalorder %s99, %s102
      %p111 = scmp.eq.s32.totalorder %s21, 7
      %p112 = por %p110, %p111
      %p113 = scmp.ne.s32.totalorder %s102, %s103
      %p114 = scmp.eq.s32.totalorder %s21, 0
      %p115 = por %p113, %p114
      %p116 = scmp.ne.s32.totalorder %s102, %s103
      %p117 = scmp.eq.s32.totalorder %s22, 7
      %p118 = por %p116, %p117
      %p120 = scmp.ne.s32.totalorder %s103, %s119
      %p121 = scmp.eq.s32.totalorder %s22, 0
      %p122 = por %p120, %p121
      %s123 = ssub.s32 %s25, %s34
      %p124 = scmp.eq.s32.totalorder %s123, 0
      %s126 = sadd.s32 %s125, 1
      %s127 = scalar_select %p124, %s125, %s126
      %p130 = pneg %p124
      %p131 = scmp.eq.s32.totalorder %s16, 7
      %p132 = por %p130, %p131
      %p133 = scmp.ne.s32.totalorder %s125, %s128
      %p134 = scmp.eq.s32.totalorder %s16, 0
      %p135 = por %p133, %p134
      %p136 = scmp.ne.s32.totalorder %s125, %s128
      %p137 = scmp.eq.s32.totalorder %s21, 7
      %p138 = por %p136, %p137
      %p139 = scmp.ne.s32.totalorder %s128, %s129
      %p140 = scmp.eq.s32.totalorder %s21, 0
      %p141 = por %p139, %p140
      %p142 = scmp.ne.s32.totalorder %s128, %s129
      %p143 = scmp.eq.s32.totalorder %s22, 7
      %p144 = por %p142, %p143
      %p146 = scmp.ne.s32.totalorder %s129, %s145
      %p147 = scmp.eq.s32.totalorder %s22, 0
      %p148 = por %p146, %p147
      %s149 = ssub.s32 %s25, %s34
      %p150 = scmp.eq.s32.totalorder %s149, 0
      %s152 = sadd.s32 %s151, 1
      %s153 = scalar_select %p150, %s151, %s152
      %p156 = pneg %p150
      %p157 = scmp.eq.s32.totalorder %s16, 7
      %p158 = por %p156, %p157
      %p159 = scmp.ne.s32.totalorder %s151, %s154
      %p160 = scmp.eq.s32.totalorder %s16, 0
      %p161 = por %p159, %p160
      %p162 = scmp.ne.s32.totalorder %s151, %s154
      %p163 = scmp.eq.s32.totalorder %s21, 7
      %p164 = por %p162, %p163
      %p165 = scmp.ne.s32.totalorder %s154, %s155
      %p166 = scmp.eq.s32.totalorder %s21, 0
      %p167 = por %p165, %p166
      %p168 = scmp.ne.s32.totalorder %s154, %s155
      %p169 = scmp.eq.s32.totalorder %s22, 7
      %p170 = por %p168, %p169
      %p172 = scmp.ne.s32.totalorder %s155, %s171
      %p173 = scmp.eq.s32.totalorder %s22, 0
      %p174 = por %p172, %p173
      %s175 = ssub.s32 %s25, %s34
      %p176 = scmp.eq.s32.totalorder %s175, 0
      %s178 = sadd.s32 %s177, 1
      %s179 = scalar_select %p176, %s177, %s178
      %p182 = pneg %p176
      %p183 = scmp.eq.s32.totalorder %s16, 7
      %p184 = por %p182, %p183
      %p185 = scmp.ne.s32.totalorder %s177, %s180
      %p186 = scmp.eq.s32.totalorder %s16, 0
      %p187 = por %p185, %p186
      %p188 = scmp.ne.s32.totalorder %s177, %s180
      %p189 = scmp.eq.s32.totalorder %s21, 7
      %p190 = por %p188, %p189
      %p191 = scmp.ne.s32.totalorder %s180, %s181
      %p192 = scmp.eq.s32.totalorder %s21, 0
      %p193 = por %p191, %p192
      %p194 = scmp.ne.s32.totalorder %s180, %s181
      %p195 = scmp.eq.s32.totalorder %s22, 7
      %p196 = por %p194, %p195
      %p198 = scmp.ne.s32.totalorder %s181, %s197
      %p199 = scmp.eq.s32.totalorder %s22, 0
      %p200 = por %p198, %p199
      %s202 = sadd.s32 %s201, 1
      %p205 = scmp.eq.s32.totalorder %s16, 7
      %p206 = scmp.ne.s32.totalorder %s201, %s203
      %p207 = scmp.eq.s32.totalorder %s16, 0
      %p208 = por %p206, %p207
      %p209 = scmp.ne.s32.totalorder %s201, %s203
      %p210 = scmp.eq.s32.totalorder %s21, 7
      %p211 = por %p209, %p210
      %p212 = scmp.ne.s32.totalorder %s203, %s204
      %p213 = scmp.eq.s32.totalorder %s21, 0
      %p214 = por %p212, %p213
      %p215 = scmp.ne.s32.totalorder %s203, %s204
      %p216 = scmp.eq.s32.totalorder %s22, 7
      %p217 = por %p215, %p216
      %p219 = scmp.ne.s32.totalorder %s204, %s218
      %p220 = scmp.eq.s32.totalorder %s22, 0
      %p221 = por %p219, %p220
      %s222 = ssub.s32 %s23, %s42
      %s223 = ssub.s32 %s24, %s38
      %s224 = sor.u32 %s222, %s223
      %p225 = scmp.eq.s32.totalorder %s224, 0
      %s227 = sadd.s32 %s226, 1
      %s228 = scalar_select %p225, %s226, %s227
      %p231 = pneg %p225
      %p232 = scmp.eq.s32.totalorder %s16, 7
      %p233 = por %p231, %p232
      %p234 = scmp.ne.s32.totalorder %s226, %s229
      %p235 = scmp.eq.s32.totalorder %s16, 0
      %p236 = por %p234, %p235
      %p237 = scmp.ne.s32.totalorder %s226, %s229
      %p238 = scmp.eq.s32.totalorder %s21, 7
      %p239 = por %p237, %p238
      %p240 = scmp.ne.s32.totalorder %s229, %s230
      %p241 = scmp.eq.s32.totalorder %s21, 0
      %p242 = por %p240, %p241
      %p243 = scmp.ne.s32.totalorder %s229, %s230
      %p244 = scmp.eq.s32.totalorder %s22, 7
      %p245 = por %p243, %p244
      %p247 = scmp.ne.s32.totalorder %s230, %s246
      %p248 = scmp.eq.s32.totalorder %s22, 0
      %p249 = por %p247, %p248
      %p250 = scmp.le.s32.totalorder 1, %s16
      %p251 = scmp.lt.s32.totalorder %s16, 9
      %p252 = pnand %p250, %p251
      %p253 = pneg %p252
      // Predicated region
      $region9: #{tpu_custom_call.1} parent=5 // pred_check
        _
      $region10: #{tpu_custom_call.1} parent=5 // pred_check_branch
        %255 = sbr.rel (%p252) target = $region12
      $region11: #{tpu_custom_call.1} parent=5 // pred_region
        %s256 = ssub.s32 %s16, 1
        // Predicated region
        $region13: #{tpu_custom_call.1} parent=11 // pred_check
          %p257 = pneg %p214
        $region14: #{tpu_custom_call.1} parent=11 // pred_check_branch
          %259 = sbr.rel (%p257) target = $region16
        $region15: #{tpu_custom_call.1} parent=11 // pred_region
          _
        $region16: #{tpu_custom_call.1} parent=11 // pred_fallthru
          _
      $region12: #{tpu_custom_call.1} parent=5 // pred_fallthru
        _
      %p260 = scmp.lt.s32.totalorder %s16, 8
      // Predicated region
      $region17: #{tpu_custom_call.1} parent=5 // pred_check
        %p261 = pneg %p260
      $region18: #{tpu_custom_call.1} parent=5 // pred_check_branch
        %263 = sbr.rel (%p261) target = $region20
      $region19: #{tpu_custom_call.1} parent=5 // pred_region
        // Predicated region
        $region21: #{tpu_custom_call.1} parent=19 // pred_check
          %p264 = pneg %p55
        $region22: #{tpu_custom_call.1} parent=19 // pred_check_branch
          %266 = sbr.rel (%p264) target = $region24
        $region23: #{tpu_custom_call.1} parent=19 // pred_region
          %p267 = scmp.lt.s32.totalorder %s23, 1
          %s268 = scalar_select %p267, %s23, 1
          %s269 = smul.addr %s268, 8
          %s270 = scalar_lea.vmem %s0, %s269
        $region24: #{tpu_custom_call.1} parent=19 // pred_fallthru
          _
        // Predicated region
        $region25: #{tpu_custom_call.1} parent=19 // pred_check
          %p271 = pneg %p83
        $region26: #{tpu_custom_call.1} parent=19 // pred_check_branch
          %273 = sbr.rel (%p271) target = $region28
        $region27: #{tpu_custom_call.1} parent=19 // pred_region
          %p274 = scmp.lt.s32.totalorder %s23, 1
          %s275 = scalar_select %p274, %s23, 1
          %p276 = scmp.lt.s32.totalorder %s24, 0
          %s277 = scalar_select %p276, %s24, 0
          %s278 = sadd.s32 %s277, %s275
          %s279 = smul.addr %s278, 8
          %s280 = scalar_lea.vmem %s1, %s279
        $region28: #{tpu_custom_call.1} parent=19 // pred_fallthru
          _
        // Predicated region
        $region29: #{tpu_custom_call.1} parent=19 // pred_check
          %p281 = pneg %p109
        $region30: #{tpu_custom_call.1} parent=19 // pred_check_branch
          %283 = sbr.rel (%p281) target = $region32
        $region31: #{tpu_custom_call.1} parent=19 // pred_region
          %p284 = scmp.lt.s32.totalorder %s25, 3
          %s285 = scalar_select %p284, %s25, 3
          %s286 = smul.addr %s285, 4
          %s287 = smul.addr %s286, 8
          %s288 = scalar_lea.vmem %s2, %s287
        $region32: #{tpu_custom_call.1} parent=19 // pred_fallthru
          _
        // Predicated region
        $region33: #{tpu_custom_call.1} parent=19 // pred_check
          %p289 = pneg %p135
        $region34: #{tpu_custom_call.1} parent=19 // pred_check_branch
          %291 = sbr.rel (%p289) target = $region36
        $region35: #{tpu_custom_call.1} parent=19 // pred_region
          %p292 = scmp.lt.s32.totalorder %s25, 3
          %s293 = scalar_select %p292, %s25, 3
          %s294 = smul.addr %s293, 4
          %s295 = smul.addr %s294, 8
          %s296 = scalar_lea.vmem %s3, %s295
        $region36: #{tpu_custom_call.1} parent=19 // pred_fallthru
          _
        // Predicated region
        $region37: #{tpu_custom_call.1} parent=19 // pred_check
          %p297 = pneg %p161
        $region38: #{tpu_custom_call.1} parent=19 // pred_check_branch
          %299 = sbr.rel (%p297) target = $region40
        $region39: #{tpu_custom_call.1} parent=19 // pred_region
          %p300 = scmp.lt.s32.totalorder %s25, 3
          %s301 = scalar_select %p300, %s25, 3
          %s302 = smul.addr %s301, 4
          %s303 = smul.addr %s302, 8
          %s304 = scalar_lea.vmem %s4, %s303
        $region40: #{tpu_custom_call.1} parent=19 // pred_fallthru
          _
        // Predicated region
        $region41: #{tpu_custom_call.1} parent=19 // pred_check
          %p305 = pneg %p187
        $region42: #{tpu_custom_call.1} parent=19 // pred_check_branch
          %307 = sbr.rel (%p305) target = $region44
        $region43: #{tpu_custom_call.1} parent=19 // pred_region
          %p308 = scmp.lt.s32.totalorder %s25, 3
          %s309 = scalar_select %p308, %s25, 3
          %s310 = smul.addr %s309, 8
          %s311 = scalar_lea.vmem %s5, %s310
        $region44: #{tpu_custom_call.1} parent=19 // pred_fallthru
          _
      $region20: #{tpu_custom_call.1} parent=5 // pred_fallthru
        _
      %p312 = scmp.le.s32.totalorder 1, %s16
      %p313 = scmp.lt.s32.totalorder %s16, 9
      %p314 = pnand %p312, %p313
      %p315 = pneg %p314
      // Predicated region
      $region45: #{tpu_custom_call.1} parent=5 // pred_check
        _
      $region46: #{tpu_custom_call.1} parent=5 // pred_check_branch
        %317 = sbr.rel (%p314) target = $region48
      $region47: #{tpu_custom_call.1} parent=5 // pred_region
        %s318 = ssub.s32 %s16, 1
        %p319 = scmp.lt.s32.totalorder %s26, 1
        %s320 = scalar_select %p319, %s26, 1
        %s321 = smul.addr %s320, 8
        %s322 = scalar_lea.vmem %s0, %s321
        %p323 = pneg %p61
        %p324 = pneg %p58
        %p325 = scmp.lt.s32.totalorder %s26, 1
        %s326 = scalar_select %p325, %s26, 1
        %p327 = scmp.lt.s32.totalorder %s27, 0
        %s328 = scalar_select %p327, %s27, 0
        %s329 = sadd.s32 %s328, %s326
        %s330 = smul.addr %s329, 8
        %s331 = scalar_lea.vmem %s1, %s330
        %p332 = pneg %p89
        %p333 = pneg %p86
        %p334 = scmp.lt.s32.totalorder %s28, 3
        %s335 = scalar_select %p334, %s28, 3
        %s336 = smul.addr %s335, 4
        %s337 = smul.addr %s336, 8
        %s338 = scalar_lea.vmem %s2, %s337
        %p339 = pneg %p115
        %p340 = pneg %p112
        %p341 = scmp.lt.s32.totalorder %s28, 3
        %s342 = scalar_select %p341, %s28, 3
        %s343 = smul.addr %s342, 4
        %s344 = smul.addr %s343, 8
        %s345 = scalar_lea.vmem %s3, %s344
        %p346 = pneg %p141
        %p347 = pneg %p138
        %p348 = scmp.lt.s32.totalorder %s28, 3
        %s349 = scalar_select %p348, %s28, 3
        %s350 = smul.addr %s349, 4
        %s351 = smul.addr %s350, 8
        %s352 = scalar_lea.vmem %s4, %s351
        %p353 = pneg %p167
        %p354 = pneg %p164
        %p355 = scmp.lt.s32.totalorder %s28, 3
        %s356 = scalar_select %p355, %s28, 3
        %s357 = smul.addr %s356, 8
        %s358 = scalar_lea.vmem %s5, %s357
        %p359 = pneg %p193
        %p360 = pneg %p190
        %p361 = pneg %p214
        %p362 = pneg %p211
        %p363 = pneg %p242
        %p364 = pneg %p239
        %s365 = sand.u32 %s229, 1
        %s366 = scalar_lea.sflag [#allocation4], %s365
        %s367 = sand.u32 %s229, 1
        %s368 = smul.addr %s367, 8
        %s369 = scalar_lea.vmem [#allocation3], %s368
        %p370 = scmp.lt.s32.totalorder %s26, 1
        %s371 = scalar_select %p370, %s26, 1
        %s372 = smul.addr %s371, 8
        %s373 = scalar_lea.vmem %s0, %s372
        %p374 = scmp.lt.s32.totalorder %s26, 1
        %s375 = scalar_select %p374, %s26, 1
        %p376 = scmp.lt.s32.totalorder %s27, 0
        %s377 = scalar_select %p376, %s27, 0
        %s378 = sadd.s32 %s377, %s375
        %s379 = smul.addr %s378, 8
        %s380 = scalar_lea.vmem %s1, %s379
        %p381 = scmp.lt.s32.totalorder %s28, 3
        %s382 = scalar_select %p381, %s28, 3
        %s383 = smul.addr %s382, 4
        %s384 = smul.addr %s383, 8
        %s385 = scalar_lea.vmem %s2, %s384
        %p386 = scmp.lt.s32.totalorder %s28, 3
        %s387 = scalar_select %p386, %s28, 3
        %s388 = smul.addr %s387, 4
        %s389 = smul.addr %s388, 8
        %s390 = scalar_lea.vmem %s3, %s389
        %p391 = scmp.lt.s32.totalorder %s28, 3
        %s392 = scalar_select %p391, %s28, 3
        %s393 = smul.addr %s392, 4
        %s394 = smul.addr %s393, 8
        %s395 = scalar_lea.vmem %s4, %s394
        %p396 = scmp.lt.s32.totalorder %s28, 3
        %s397 = scalar_select %p396, %s28, 3
        %s398 = smul.addr %s397, 8
        %s399 = scalar_lea.vmem %s5, %s398
        %v400 = vld [vmem:[%s373] sm:$0xff]
        %v401 = vld [vmem:[%s380] sm:$0xff]
        %v402 = vld [vmem:[%s385] sm:$0xff]
        %v403 = vld [vmem:[%s385 + $0x8] sm:$0xff]
        %v404 = vld [vmem:[%s385 + $0x10] sm:$0xff]
        %v405 = vld [vmem:[%s385 + $0x18] sm:$0xff]
        %vm406 = vcmask 261120
        %v408 = vsel %vm406, %v401, 0
        %410 = vmatprep.subr.mxu0 0.0
        %411 = vmatpush1.msra.mxu0 %v402
        %412 = vmatprep.subr.mxu0 0.0
        %413 = vmatpush1.msra.mxu0 %v403
        %414 = vmatprep.subr.mxu0 0.0
        %415 = vmatpush1.msra.mxu0 %v404
        %416 = vmatprep.subr.mxu0 0.0
        %417 = vmatpush1.msra.mxu0 %v405
        %418 = vmatprep.subr.mxu0 0.0
        %419 = vmatpush1.msra.mxu0 0.0
        %420 = vmatprep.subr.mxu0 0.0
        %421 = vmatpush1.msra.mxu0 0.0
        %422 = vmatprep.subr.mxu0 0.0
        %423 = vmatpush1.msra.mxu0 0.0
        %424 = vmatprep.subr.mxu0 0.0
        %425 = vmatpush1.msra.mxu0 0.0
        %426 = vmatprep.subr.mxu0 0.0
        %427 = vmatpush1.msra.mxu0 0.0
        %428 = vmatprep.subr.mxu0 0.0
        %429 = vmatpush1.msra.mxu0 0.0
        %430 = vmatprep.subr.mxu0 0.0
        %431 = vmatpush1.msra.mxu0 0.0
        %432 = vmatprep.subr.mxu0 0.0
        %433 = vmatpush1.msra.mxu0 0.0
        %434 = vmatprep.subr.mxu0 0.0
        %435 = vmatpush1.msra.mxu0 0.0
        %436 = vmatprep.subr.mxu0 0.0
        %437 = vmatpush1.msra.mxu0 0.0
        %438 = vmatprep.subr.mxu0 0.0
        %439 = vmatpush1.msra.mxu0 0.0
        %440 = vmatprep.subr.mxu0 0.0
        %441 = vmatpush1.msra.mxu0 0.0
        %442 = vmatprep.subr.mxu0 0.0
        %443 = vmatpush1.msra.mxu0 0.0
        %444 = vmatprep.subr.mxu0 0.0
        %445 = vmatpush1.msra.mxu0 0.0
        %446 = vmatprep.subr.mxu0 0.0
        %447 = vmatpush1.msra.mxu0 0.0
        %448 = vmatprep.subr.mxu0 0.0
        %449 = vmatpush1.msra.mxu0 0.0
        %450 = vmatprep.subr.mxu0 0.0
        %451 = vmatpush1.msra.mxu0 0.0
        %452 = vmatprep.subr.mxu0 0.0
        %453 = vmatpush1.msra.mxu0 0.0
        %454 = vmatprep.subr.mxu0 0.0
        %455 = vmatpush1.msra.mxu0 0.0
        %456 = vmatprep.subr.mxu0 0.0
        %457 = vmatpush1.msra.mxu0 0.0
        %458 = vmatprep.subr.mxu0 0.0
        %459 = vmatpush1.msra.mxu0 0.0
        %460 = vmatprep.subr.mxu0 0.0
        %461 = vmatpush1.msra.mxu0 0.0
        %462 = vmatprep.subr.mxu0 0.0
        %463 = vmatpush1.msra.mxu0 0.0
        %464 = vmatprep.subr.mxu0 0.0
        %465 = vmatpush1.msra.mxu0 0.0
        %466 = vmatprep.subr.mxu0 0.0
        %467 = vmatpush1.msra.mxu0 0.0
        %468 = vmatprep.subr.mxu0 0.0
        %469 = vmatpush1.msra.mxu0 0.0
        %470 = vmatprep.subr.mxu0 0.0
        %471 = vmatpush1.msra.mxu0 0.0
        %472 = vmatprep.subr.mxu0 0.0
        %473 = vmatpush1.msra.mxu0 0.0
        %474 = vmatprep.mubr.f32.mxu0 0.0
        %475 = vmatmul.mubr.f32.gmra.mrb[0].mxu0 %v408
        %v476 = vpop.f32.mrb[0].mxu0
        %v477 = vadd.f32 0.0, %v476
        %v478 = vpop.f32.mrb[0].mxu0
        %479 = vdwg.mxu0
        %v480 = vld [vmem:[%s390] sm:$0xff]
        %v481 = vld [vmem:[%s390 + $0x8] sm:$0xff]
        %v482 = vld [vmem:[%s390 + $0x10] sm:$0xff]
        %v483 = vld [vmem:[%s390 + $0x18] sm:$0xff]
        %v485 = vsel %vm406, %v400, 0
        %487 = vmatprep.subr.mxu0 0.0
        %488 = vmatpush1.msra.mxu0 %v480
        %489 = vmatprep.subr.mxu0 0.0
        %490 = vmatpush1.msra.mxu0 %v481
        %491 = vmatprep.subr.mxu0 0.0
        %492 = vmatpush1.msra.mxu0 %v482
        %493 = vmatprep.subr.mxu0 0.0
        %494 = vmatpush1.msra.mxu0 %v483
        %495 = vmatprep.subr.mxu0 0.0
        %496 = vmatpush1.msra.mxu0 0.0
        %497 = vmatprep.subr.mxu0 0.0
        %498 = vmatpush1.msra.mxu0 0.0
        %499 = vmatprep.subr.mxu0 0.0
        %500 = vmatpush1.msra.mxu0 0.0
        %501 = vmatprep.subr.mxu0 0.0
        %502 = vmatpush1.msra.mxu0 0.0
        %503 = vmatprep.subr.mxu0 0.0
        %504 = vmatpush1.msra.mxu0 0.0
        %505 = vmatprep.subr.mxu0 0.0
        %506 = vmatpush1.msra.mxu0 0.0
        %507 = vmatprep.subr.mxu0 0.0
        %508 = vmatpush1.msra.mxu0 0.0
        %509 = vmatprep.subr.mxu0 0.0
        %510 = vmatpush1.msra.mxu0 0.0
        %511 = vmatprep.subr.mxu0 0.0
        %512 = vmatpush1.msra.mxu0 0.0
        %513 = vmatprep.subr.mxu0 0.0
        %514 = vmatpush1.msra.mxu0 0.0
        %515 = vmatprep.subr.mxu0 0.0
        %516 = vmatpush1.msra.mxu0 0.0
        %517 = vmatprep.subr.mxu0 0.0
        %518 = vmatpush1.msra.mxu0 0.0
        %519 = vmatprep.subr.mxu0 0.0
        %520 = vmatpush1.msra.mxu0 0.0
        %521 = vmatprep.subr.mxu0 0.0
        %522 = vmatpush1.msra.mxu0 0.0
        %523 = vmatprep.subr.mxu0 0.0
        %524 = vmatpush1.msra.mxu0 0.0
        %525 = vmatprep.subr.mxu0 0.0
        %526 = vmatpush1.msra.mxu0 0.0
        %527 = vmatprep.subr.mxu0 0.0
        %528 = vmatpush1.msra.mxu0 0.0
        %529 = vmatprep.subr.mxu0 0.0
        %530 = vmatpush1.msra.mxu0 0.0
        %531 = vmatprep.subr.mxu0 0.0
        %532 = vmatpush1.msra.mxu0 0.0
        %533 = vmatprep.subr.mxu0 0.0
        %534 = vmatpush1.msra.mxu0 0.0
        %535 = vmatprep.subr.mxu0 0.0
        %536 = vmatpush1.msra.mxu0 0.0
        %537 = vmatprep.subr.mxu0 0.0
        %538 = vmatpush1.msra.mxu0 0.0
        %539 = vmatprep.subr.mxu0 0.0
        %540 = vmatpush1.msra.mxu0 0.0
        %541 = vmatprep.subr.mxu0 0.0
        %542 = vmatpush1.msra.mxu0 0.0
        %543 = vmatprep.subr.mxu0 0.0
        %544 = vmatpush1.msra.mxu0 0.0
        %545 = vmatprep.subr.mxu0 0.0
        %546 = vmatpush1.msra.mxu0 0.0
        %547 = vmatprep.subr.mxu0 0.0
        %548 = vmatpush1.msra.mxu0 0.0
        %549 = vmatprep.subr.mxu0 0.0
        %550 = vmatpush1.msra.mxu0 0.0
        %551 = vmatprep.mubr.f32.mxu0 0.0
        %552 = vmatmul.mubr.f32.gmra.mrb[0].mxu0 %v485
        %v553 = vpop.f32.mrb[0].mxu0
        %v554 = vadd.f32 0.0, %v553
        %v555 = vpop.f32.mrb[0].mxu0
        %556 = vdwg.mxu0
        %v557 = vld [vmem:[%s395] sm:$0xff]
        %v558 = vld [vmem:[%s395 + $0x8] sm:$0xff]
        %v559 = vld [vmem:[%s395 + $0x10] sm:$0xff]
        %v560 = vld [vmem:[%s395 + $0x18] sm:$0xff]
        %561 = vmatprep.subr.mxu0 0.0
        %562 = vmatpush1.msra.mxu0 %v557
        %563 = vmatprep.subr.mxu0 0.0
        %564 = vmatpush1.msra.mxu0 %v558
        %565 = vmatprep.subr.mxu0 0.0
        %566 = vmatpush1.msra.mxu0 %v559
        %567 = vmatprep.subr.mxu0 0.0
        %568 = vmatpush1.msra.mxu0 %v560
        %569 = vmatprep.subr.mxu0 0.0
        %570 = vmatpush1.msra.mxu0 0.0
        %571 = vmatprep.subr.mxu0 0.0
        %572 = vmatpush1.msra.mxu0 0.0
        %573 = vmatprep.subr.mxu0 0.0
        %574 = vmatpush1.msra.mxu0 0.0
        %575 = vmatprep.subr.mxu0 0.0
        %576 = vmatpush1.msra.mxu0 0.0
        %577 = vmatprep.subr.mxu0 0.0
        %578 = vmatpush1.msra.mxu0 0.0
        %579 = vmatprep.subr.mxu0 0.0
        %580 = vmatpush1.msra.mxu0 0.0
        %581 = vmatprep.subr.mxu0 0.0
        %582 = vmatpush1.msra.mxu0 0.0
        %583 = vmatprep.subr.mxu0 0.0
        %584 = vmatpush1.msra.mxu0 0.0
        %585 = vmatprep.subr.mxu0 0.0
        %586 = vmatpush1.msra.mxu0 0.0
        %587 = vmatprep.subr.mxu0 0.0
        %588 = vmatpush1.msra.mxu0 0.0
        %589 = vmatprep.subr.mxu0 0.0
        %590 = vmatpush1.msra.mxu0 0.0
        %591 = vmatprep.subr.mxu0 0.0
        %592 = vmatpush1.msra.mxu0 0.0
        %593 = vmatprep.subr.mxu0 0.0
        %594 = vmatpush1.msra.mxu0 0.0
        %595 = vmatprep.subr.mxu0 0.0
        %596 = vmatpush1.msra.mxu0 0.0
        %597 = vmatprep.subr.mxu0 0.0
        %598 = vmatpush1.msra.mxu0 0.0
        %599 = vmatprep.subr.mxu0 0.0
        %600 = vmatpush1.msra.mxu0 0.0
        %601 = vmatprep.subr.mxu0 0.0
        %602 = vmatpush1.msra.mxu0 0.0
        %603 = vmatprep.subr.mxu0 0.0
        %604 = vmatpush1.msra.mxu0 0.0
        %605 = vmatprep.subr.mxu0 0.0
        %606 = vmatpush1.msra.mxu0 0.0
        %607 = vmatprep.subr.mxu0 0.0
        %608 = vmatpush1.msra.mxu0 0.0
        %609 = vmatprep.subr.mxu0 0.0
        %610 = vmatpush1.msra.mxu0 0.0
        %611 = vmatprep.subr.mxu0 0.0
        %612 = vmatpush1.msra.mxu0 0.0
        %613 = vmatprep.subr.mxu0 0.0
        %614 = vmatpush1.msra.mxu0 0.0
        %615 = vmatprep.subr.mxu0 0.0
        %616 = vmatpush1.msra.mxu0 0.0
        %617 = vmatprep.subr.mxu0 0.0
        %618 = vmatpush1.msra.mxu0 0.0
        %619 = vmatprep.subr.mxu0 0.0
        %620 = vmatpush1.msra.mxu0 0.0
        %621 = vmatprep.subr.mxu0 0.0
        %622 = vmatpush1.msra.mxu0 0.0
        %623 = vmatprep.subr.mxu0 0.0
        %624 = vmatpush1.msra.mxu0 0.0
        %625 = vmatprep.mubr.f32.mxu0 0.0
        %626 = vmatmul.mubr.f32.gmra.mrb[0].mxu0 %v485
        %v627 = vpop.f32.mrb[0].mxu0
        %v628 = vadd.f32 0.0, %v627
        %v629 = vpop.f32.mrb[0].mxu0
        %630 = vdwg.mxu0
        %vm631 = vcmask 64512
        %v633 = vsel %vm631, %v477, 0
        %v636 = vsel %vm631, %v554, 0
        %638 = vmatprep.subr.mxu0 0.0
        %639 = vmatpush1.xpose.msra.mxu0 %v636
        %640 = vmatprep.subr.mxu0 0.0
        %641 = vmatpush1.xpose.msra.mxu0 0.0
        %642 = vmatprep.subr.mxu0 0.0
        %643 = vmatpush1.xpose.msra.mxu0 0.0
        %644 = vmatprep.subr.mxu0 0.0
        %645 = vmatpush1.xpose.msra.mxu0 0.0
        %646 = vmatprep.subr.mxu0 0.0
        %647 = vmatpush1.xpose.msra.mxu0 0.0
        %648 = vmatprep.subr.mxu0 0.0
        %649 = vmatpush1.xpose.msra.mxu0 0.0
        %650 = vmatprep.subr.mxu0 0.0
        %651 = vmatpush1.xpose.msra.mxu0 0.0
        %652 = vmatprep.subr.mxu0 0.0
        %653 = vmatpush1.xpose.msra.mxu0 0.0
        %654 = vmatprep.subr.mxu0 0.0
        %655 = vmatpush1.xpose.msra.mxu0 0.0
        %656 = vmatprep.subr.mxu0 0.0
        %657 = vmatpush1.xpose.msra.mxu0 0.0
        %658 = vmatprep.subr.mxu0 0.0
        %659 = vmatpush1.xpose.msra.mxu0 0.0
        %660 = vmatprep.subr.mxu0 0.0
        %661 = vmatpush1.xpose.msra.mxu0 0.0
        %662 = vmatprep.subr.mxu0 0.0
        %663 = vmatpush1.xpose.msra.mxu0 0.0
        %664 = vmatprep.subr.mxu0 0.0
        %665 = vmatpush1.xpose.msra.mxu0 0.0
        %666 = vmatprep.subr.mxu0 0.0
        %667 = vmatpush1.xpose.msra.mxu0 0.0
        %668 = vmatprep.subr.mxu0 0.0
        %669 = vmatpush1.xpose.msra.mxu0 0.0
        %670 = vmatprep.subr.mxu0 0.0
        %671 = vmatpush1.xpose.msra.mxu0 0.0
        %672 = vmatprep.subr.mxu0 0.0
        %673 = vmatpush1.xpose.msra.mxu0 0.0
        %674 = vmatprep.subr.mxu0 0.0
        %675 = vmatpush1.xpose.msra.mxu0 0.0
        %676 = vmatprep.subr.mxu0 0.0
        %677 = vmatpush1.xpose.msra.mxu0 0.0
        %678 = vmatprep.subr.mxu0 0.0
        %679 = vmatpush1.xpose.msra.mxu0 0.0
        %680 = vmatprep.subr.mxu0 0.0
        %681 = vmatpush1.xpose.msra.mxu0 0.0
        %682 = vmatprep.subr.mxu0 0.0
        %683 = vmatpush1.xpose.msra.mxu0 0.0
        %684 = vmatprep.subr.mxu0 0.0
        %685 = vmatpush1.xpose.msra.mxu0 0.0
        %686 = vmatprep.subr.mxu0 0.0
        %687 = vmatpush1.xpose.msra.mxu0 0.0
        %688 = vmatprep.subr.mxu0 0.0
        %689 = vmatpush1.xpose.msra.mxu0 0.0
        %690 = vmatprep.subr.mxu0 0.0
        %691 = vmatpush1.xpose.msra.mxu0 0.0
        %692 = vmatprep.subr.mxu0 0.0
        %693 = vmatpush1.xpose.msra.mxu0 0.0
        %694 = vmatprep.subr.mxu0 0.0
        %695 = vmatpush1.xpose.msra.mxu0 0.0
        %696 = vmatprep.subr.mxu0 0.0
        %697 = vmatpush1.xpose.msra.mxu0 0.0
        %698 = vmatprep.subr.mxu0 0.0
        %699 = vmatpush1.xpose.msra.mxu0 0.0
        %700 = vmatprep.subr.mxu0 0.0
        %701 = vmatpush1.xpose.msra.mxu0 0.0
        %702 = vmatprep.mubr.f32.mxu0 0.0
        %703 = vmatmul.mubr.f32.gmra.mrb[0].mxu0 %v633
        %v704 = vpop.f32.mrb[0].mxu0
        %v705 = vadd.f32 0.0, %v704
        %v706 = vpop.f32.mrb[0].mxu0
        %707 = vdwg.mxu0
        %s708 = smul.u32 %s27, 8
        %v709 = vlaneseq
        %v710 = vshrl.u32 %v709, 7
        %v711 = vstv %s708
        %v712 = vadd.s32 %v711, %v710
        %v713 = vlaneseq
        %v714 = vand.u32 %v713, 127
        %vm715 = vcmp.eq.s32.totalorder %v712, %v714
        %v716 = vsel %vm715, -1e+30, %v705
        %v717 = vsel %vm631, %v716, -inf
        %718 = vmax.xlane.f32.xlu0 %v717
        %v719 = vpop.xlane.xlu0 %718
        %v720 = vsub.f32 %v716, %v719
        %v721 = vmul.f32 %v720, 1.442695
        %v722 = vpow.pop %v721
        %v723 = vsel %vm631, %v722, 0.0
        %724 = vadd.xlane.f32.xlu0 %v723
        %v725 = vpop.xlane.xlu0 %724
        %v726 = vrcp.pop %v725
        %v727 = vmul.f32 %v722, %v726
        %v729 = vsel %vm631, %v727, 0
        %731 = vmatprep.subr.mxu0 0.0
        %732 = vmatpush1.msra.mxu0 %v628
        %733 = vmatprep.subr.mxu0 0.0
        %734 = vmatpush1.msra.mxu0 0.0
        %735 = vmatprep.subr.mxu0 0.0
        %736 = vmatpush1.msra.mxu0 0.0
        %737 = vmatprep.subr.mxu0 0.0
        %738 = vmatpush1.msra.mxu0 0.0
        %739 = vmatprep.subr.mxu0 0.0
        %740 = vmatpush1.msra.mxu0 0.0
        %741 = vmatprep.subr.mxu0 0.0
        %742 = vmatpush1.msra.mxu0 0.0
        %743 = vmatprep.subr.mxu0 0.0
        %744 = vmatpush1.msra.mxu0 0.0
        %745 = vmatprep.subr.mxu0 0.0
        %746 = vmatpush1.msra.mxu0 0.0
        %747 = vmatprep.subr.mxu0 0.0
        %748 = vmatpush1.msra.mxu0 0.0
        %749 = vmatprep.subr.mxu0 0.0
        %750 = vmatpush1.msra.mxu0 0.0
        %751 = vmatprep.subr.mxu0 0.0
        %752 = vmatpush1.msra.mxu0 0.0
        %753 = vmatprep.subr.mxu0 0.0
        %754 = vmatpush1.msra.mxu0 0.0
        %755 = vmatprep.subr.mxu0 0.0
        %756 = vmatpush1.msra.mxu0 0.0
        %757 = vmatprep.subr.mxu0 0.0
        %758 = vmatpush1.msra.mxu0 0.0
        %759 = vmatprep.subr.mxu0 0.0
        %760 = vmatpush1.msra.mxu0 0.0
        %761 = vmatprep.subr.mxu0 0.0
        %762 = vmatpush1.msra.mxu0 0.0
        %763 = vmatprep.subr.mxu0 0.0
        %764 = vmatpush1.msra.mxu0 0.0
        %765 = vmatprep.subr.mxu0 0.0
        %766 = vmatpush1.msra.mxu0 0.0
        %767 = vmatprep.subr.mxu0 0.0
        %768 = vmatpush1.msra.mxu0 0.0
        %769 = vmatprep.subr.mxu0 0.0
        %770 = vmatpush1.msra.mxu0 0.0
        %771 = vmatprep.subr.mxu0 0.0
        %772 = vmatpush1.msra.mxu0 0.0
        %773 = vmatprep.subr.mxu0 0.0
        %774 = vmatpush1.msra.mxu0 0.0
        %775 = vmatprep.subr.mxu0 0.0
        %776 = vmatpush1.msra.mxu0 0.0
        %777 = vmatprep.subr.mxu0 0.0
        %778 = vmatpush1.msra.mxu0 0.0
        %779 = vmatprep.subr.mxu0 0.0
        %780 = vmatpush1.msra.mxu0 0.0
        %781 = vmatprep.subr.mxu0 0.0
        %782 = vmatpush1.msra.mxu0 0.0
        %783 = vmatprep.subr.mxu0 0.0
        %784 = vmatpush1.msra.mxu0 0.0
        %785 = vmatprep.subr.mxu0 0.0
        %786 = vmatpush1.msra.mxu0 0.0
        %787 = vmatprep.subr.mxu0 0.0
        %788 = vmatpush1.msra.mxu0 0.0
        %789 = vmatprep.subr.mxu0 0.0
        %790 = vmatpush1.msra.mxu0 0.0
        %791 = vmatprep.subr.mxu0 0.0
        %792 = vmatpush1.msra.mxu0 0.0
        %793 = vmatprep.subr.mxu0 0.0
        %794 = vmatpush1.msra.mxu0 0.0
        %795 = vmatprep.mubr.f32.mxu0 0.0
        %796 = vmatmul.mubr.f32.gmra.mrb[0].mxu0 %v729
        %v797 = vpop.f32.mrb[0].mxu0
        %v798 = vadd.f32 0.0, %v797
        %v799 = vpop.f32.mrb[0].mxu0
        %800 = vdwg.mxu0
        %v801 = vld [vmem:[%s399] sm:$0xff]
        %v803 = vsel %vm631, %v798, 0
        %805 = vmatprep.subr.mxu0 0.0
        %806 = vmatpush1.msra.mxu0 %v801
        %807 = vmatprep.subr.mxu0 0.0
        %808 = vmatpush1.msra.mxu0 0.0
        %809 = vmatprep.subr.mxu0 0.0
        %810 = vmatpush1.msra.mxu0 0.0
        %811 = vmatprep.subr.mxu0 0.0
        %812 = vmatpush1.msra.mxu0 0.0
        %813 = vmatprep.subr.mxu0 0.0
        %814 = vmatpush1.msra.mxu0 0.0
        %815 = vmatprep.subr.mxu0 0.0
        %816 = vmatpush1.msra.mxu0 0.0
        %817 = vmatprep.subr.mxu0 0.0
        %818 = vmatpush1.msra.mxu0 0.0
        %819 = vmatprep.subr.mxu0 0.0
        %820 = vmatpush1.msra.mxu0 0.0
        %821 = vmatprep.subr.mxu0 0.0
        %822 = vmatpush1.msra.mxu0 0.0
        %823 = vmatprep.subr.mxu0 0.0
        %824 = vmatpush1.msra.mxu0 0.0
        %825 = vmatprep.subr.mxu0 0.0
        %826 = vmatpush1.msra.mxu0 0.0
        %827 = vmatprep.subr.mxu0 0.0
        %828 = vmatpush1.msra.mxu0 0.0
        %829 = vmatprep.subr.mxu0 0.0
        %830 = vmatpush1.msra.mxu0 0.0
        %831 = vmatprep.subr.mxu0 0.0
        %832 = vmatpush1.msra.mxu0 0.0
        %833 = vmatprep.subr.mxu0 0.0
        %834 = vmatpush1.msra.mxu0 0.0
        %835 = vmatprep.subr.mxu0 0.0
        %836 = vmatpush1.msra.mxu0 0.0
        %837 = vmatprep.subr.mxu0 0.0
        %838 = vmatpush1.msra.mxu0 0.0
        %839 = vmatprep.subr.mxu0 0.0
        %840 = vmatpush1.msra.mxu0 0.0
        %841 = vmatprep.subr.mxu0 0.0
        %842 = vmatpush1.msra.mxu0 0.0
        %843 = vmatprep.subr.mxu0 0.0
        %844 = vmatpush1.msra.mxu0 0.0
        %845 = vmatprep.subr.mxu0 0.0
        %846 = vmatpush1.msra.mxu0 0.0
        %847 = vmatprep.subr.mxu0 0.0
        %848 = vmatpush1.msra.mxu0 0.0
        %849 = vmatprep.subr.mxu0 0.0
        %850 = vmatpush1.msra.mxu0 0.0
        %851 = vmatprep.subr.mxu0 0.0
        %852 = vmatpush1.msra.mxu0 0.0
        %853 = vmatprep.subr.mxu0 0.0
        %854 = vmatpush1.msra.mxu0 0.0
        %855 = vmatprep.subr.mxu0 0.0
        %856 = vmatpush1.msra.mxu0 0.0
        %857 = vmatprep.subr.mxu0 0.0
        %858 = vmatpush1.msra.mxu0 0.0
        %859 = vmatprep.subr.mxu0 0.0
        %860 = vmatpush1.msra.mxu0 0.0
        %861 = vmatprep.subr.mxu0 0.0
        %862 = vmatpush1.msra.mxu0 0.0
        %863 = vmatprep.subr.mxu0 0.0
        %864 = vmatpush1.msra.mxu0 0.0
        %865 = vmatprep.subr.mxu0 0.0
        %866 = vmatpush1.msra.mxu0 0.0
        %867 = vmatprep.subr.mxu0 0.0
        %868 = vmatpush1.msra.mxu0 0.0
        %869 = vmatprep.mubr.f32.mxu0 0.0
        %870 = vmatmul.mubr.f32.gmra.mrb[0].mxu0 %v803
        %v871 = vpop.f32.mrb[0].mxu0
        %v872 = vadd.f32 0.0, %v871
        %v873 = vpop.f32.mrb[0].mxu0
        %874 = vdwg.mxu0
        %p875 = scmp.eq.s32.totalorder %s28, 0
        // Predicated region
        $region49: #{tpu_custom_call.1} parent=47 // pred_check
          %p876 = pneg %p875
        $region50: #{tpu_custom_call.1} parent=47 // pred_check_branch
          %878 = sbr.rel (%p876) target = $region52
        $region51: #{tpu_custom_call.1} parent=47 // pred_region
          %879 = vst.msk [vmem:[#allocation2] sm:$0xff] %vm406, 0.0
        $region52: #{tpu_custom_call.1} parent=47 // pred_fallthru
          _
        %v880 = vld [vmem:[#allocation2] sm:$0xff]
        %v881 = vadd.f32 %v880, %v872
        %882 = vst.msk [vmem:[#allocation2] sm:$0xff] %vm406, %v881
        %p883 = scmp.eq.s32.totalorder %s28, 3
        // Predicated region
        $region53: #{tpu_custom_call.1} parent=47 // pred_check
          %p884 = pneg %p883
        $region54: #{tpu_custom_call.1} parent=47 // pred_check_branch
          %886 = sbr.rel (%p884) target = $region56
        $region55: #{tpu_custom_call.1} parent=47 // pred_region
          %v887 = vld [vmem:[#allocation2] sm:$0xff]
          %v888 = vld [vmem:[%s6] sm:$0x1]
          %v890 = vlaneseq
          %v891 = vshrl.u32 %v890, 7
          %v892 = vsub.s32 0, %v891
          %v893 = vrot.slane %v888, %v892
          %v895 = vadd.f32 %v887, %v893
          %v896 = vadd.f32 %v895, %v401
          %897 = vst.msk [vmem:[%s369] sm:$0xff] %vm406, %v896
        $region56: #{tpu_custom_call.1} parent=47 // pred_fallthru
          _
        %s898 = sand.u32 %s229, 1
        %s899 = scalar_lea.sflag [#allocation4], %s898
        %s900 = sand.u32 %s229, 1
        %s901 = smul.addr %s900, 8
        %s902 = scalar_lea.vmem [#allocation3], %s901
        // Predicated region
        $region57: #{tpu_custom_call.1} parent=47 // pred_check
          %p903 = pneg %p239
        $region58: #{tpu_custom_call.1} parent=47 // pred_check_branch
          %905 = sbr.rel (%p903) target = $region60
        $region59: #{tpu_custom_call.1} parent=47 // pred_region
          %s907 = ssub.s32 128, 128
          %908 = vsyncadd %s899, %s907
          %s909 = sadd.s32 %s27, %s26
          %s910 = smul.addr %s909, 128
          %s911 = scalar_lea.hbm %s7, %s910
          %s913 = sshll.u32 %s902, 4
          %s914 = int_to_ptr.vmem [resolvable:$true] %s913
          %916 = dma.vmem_to_hbm [thread:$0]  %s914, 128, %s911, %s899
        $region60: #{tpu_custom_call.1} parent=47 // pred_fallthru
          _
      $region48: #{tpu_custom_call.1} parent=5 // pred_fallthru
        _
      %p917 = scmp.le.s32.totalorder 2, %s16
      // Predicated region
      $region61: #{tpu_custom_call.1} parent=5 // pred_check
        %p918 = pneg %p917
      $region62: #{tpu_custom_call.1} parent=5 // pred_check_branch
        %920 = sbr.rel (%p918) target = $region64
      $region63: #{tpu_custom_call.1} parent=5 // pred_region
        %s921 = ssub.s32 %s16, 2
        // Predicated region
        $region65: #{tpu_custom_call.1} parent=63 // pred_check
          %p922 = pneg %p245
        $region66: #{tpu_custom_call.1} parent=63 // pred_check_branch
          %924 = sbr.rel (%p922) target = $region68
        $region67: #{tpu_custom_call.1} parent=63 // pred_region
          %s925 = sand.u32 %s230, 1
          %s926 = scalar_lea.sflag [#allocation4], %s925
          %s927 = sand.u32 %s230, 1
          %s928 = smul.addr %s927, 8
          %s929 = scalar_lea.vmem [#allocation3], %s928
          %930 = dma.done %s926, 128
        $region68: #{tpu_custom_call.1} parent=63 // pred_fallthru
          _
      $region64: #{tpu_custom_call.1} parent=5 // pred_fallthru
        _
    $region6: #{tpu_custom_call.1} parent=1 // loop_footer
      %s20 = sadd.s32 1, %s16
    $region7: #{tpu_custom_call.1} parent=1 // loop_footer_branch
      %15 = sbr.rel target = $region3
    $region8: #{tpu_custom_call.1} parent=1 // loop_exit
      _
    %931 = vsyncpa [#allocation4], 1
    %s932 = scalar_lea.sflag [#allocation4], 1
    %933 = vsyncpa %s932, 1

</llo_original>
